<compile_context>
chip_gen: v5e
topology: v5e:2x2
jax: 0.10.0
libtpu: 0.0.40
codegen_flags: <defaults>
</compile_context>

<pallas_src>
import functools

import jax
import jax.numpy as jnp
import numpy as np
from jax.experimental import pallas as pl
from jax.experimental.pallas import tpu as pltpu


# ----------------------------------------------------------------------------
# Fused one-pass kernel: whole samples per block.
# ----------------------------------------------------------------------------
def _se_fused_kernel(x_ref, w1t_ref, b1_ref, w2t_ref, b2_ref, o_ref, *, inv_s):
    # x_ref: (B_blk, C, S)   w1t: (C, rd)  b1: (1, rd)  w2t: (rd, C)  b2: (1, C)
    x = x_ref[...]                                            # input dtype

    # --- Squeeze: per-(sample, channel) mean over the spatial (lane) axis.
    # TODO(synk): if a v7x bundle dump shows the XLU lane-reduce binding, move
    # this onto the idle MXU as a dot with a ones((S, 1)) column.
    mean = jnp.sum(x.astype(jnp.float32), axis=-1) * inv_s    # (B_blk, C) f32

    # --- Bottleneck (1x1x1 convs == channel matmuls), batched over the block.
    h = jnp.dot(mean, w1t_ref[...], preferred_element_type=jnp.float32)
    h = jnp.maximum(h + b1_ref[...], 0.0)                     # (B_blk, rd)
    g = jnp.dot(h, w2t_ref[...], preferred_element_type=jnp.float32)
    gate = jax.nn.sigmoid(g + b2_ref[...])                    # (B_blk, C) f32

    # --- Excite: lane-broadcast gate, multiply in the input dtype.
    o_ref[...] = (x * gate.astype(x.dtype)[:, :, None]).astype(o_ref.dtype)


# ----------------------------------------------------------------------------
# Two-pass fallback kernels (single sample too big for VMEM): S-tiled.
# ----------------------------------------------------------------------------
def _se_gate_kernel(x_ref, w1t_ref, b1_ref, w2t_ref, b2_ref, gate_ref, sum_sc,
                    *, inv_s, true_s, tile_s):
    s = pl.program_id(1)

    @pl.when(s == 0)
    def _():
        sum_sc[...] = jnp.zeros_like(sum_sc)

    x = x_ref[...]                                            # (1, C, tile_s)
    # Mask out-of-bounds tail lanes (their DMA'd contents are undefined).
    lane = jax.lax.broadcasted_iota(jnp.int32, x.shape, 2)
    valid = lane < (true_s - s * tile_s)
    xf = jnp.where(valid, x.astype(jnp.float32), 0.0)
    sum_sc[...] += jnp.sum(xf, axis=-1)                       # (1, C)

    @pl.when(s == pl.num_programs(1) - 1)
    def _():
        mean = sum_sc[...] * inv_s                            # (1, C)
        h = jnp.dot(mean, w1t_ref[...], preferred_element_type=jnp.float32)
        h = jnp.maximum(h + b1_ref[...], 0.0)                 # (1, rd)
        g = jnp.dot(h, w2t_ref[...], preferred_element_type=jnp.float32)
        gate_ref[...] = jax.nn.sigmoid(g + b2_ref[...])[:, :, None]  # (1, C, 1)


def _se_excite_kernel(x_ref, gate_ref, o_ref):
    gate = gate_ref[...].astype(o_ref.dtype)                  # (1, C, 1)
    o_ref[...] = x_ref[...] * gate                            # broadcast over S


# ----------------------------------------------------------------------------
# Sizing helpers (generation-aware).
# ----------------------------------------------------------------------------
def _vmem_limit_bytes():
    try:
        cap = pltpu.get_tpu_info().vmem_capacity_bytes
    except Exception:
        cap = 128 << 20                 # v5e/v6e default if query unavailable
    # v5e/v6e (128 MiB) -> 64 MiB scoped limit; v7x (64 MiB) -> 48 MiB.
    return min(64 << 20, (3 * cap) // 4)


def _pick_batch_block(n, bytes_per_sample, budget, min_block=1 << 20):
    """Samples per block fitting the per-buffer budget (no divisibility req)."""
    b = max(1, min(n, budget // max(bytes_per_sample, 1)))
    # Prefer >= 2 grid steps (v7x megacore) while blocks stay >= ~1 MiB.
    if n >= 2 and -(-n // b) < 2:
        half = -(-n // 2)
        if half * bytes_per_sample >= min_block:
            b = half
    return b


# ----------------------------------------------------------------------------
# Wrappers.
# ----------------------------------------------------------------------------
def _se_one_pass(x2, w1t, b1r, w2t, b2r, S, budget, vmem_limit, batch_block):
    N, C, _ = x2.shape
    rd = w1t.shape[1]
    itemsize = jnp.dtype(x2.dtype).itemsize
    bytes_per_sample = C * S * itemsize
    if batch_block is None:
        B_blk = _pick_batch_block(N, bytes_per_sample, budget)
    else:
        B_blk = max(1, min(batch_block, N))

    kernel = functools.partial(_se_fused_kernel, inv_s=1.0 / S)
    cost = pl.CostEstimate(
        flops=3 * N * C * S,
        transcendentals=N * C,
        bytes_accessed=2 * N * C * S * itemsize,
    )
    return pl.pallas_call(
        kernel,
        out_shape=jax.ShapeDtypeStruct((N, C, S), x2.dtype),
        grid=(pl.cdiv(N, B_blk),),
        in_specs=[
            pl.BlockSpec((B_blk, C, S), lambda n: (n, 0, 0)),   # x block
            pl.BlockSpec((C, rd), lambda n: (0, 0)),            # W1^T
            pl.BlockSpec((1, rd), lambda n: (0, 0)),            # b1
            pl.BlockSpec((rd, C), lambda n: (0, 0)),            # W2^T
            pl.BlockSpec((1, C), lambda n: (0, 0)),              # b2
        ],
        out_specs=pl.BlockSpec((B_blk, C, S), lambda n: (n, 0, 0)),
        compiler_params=pltpu.CompilerParams(
            dimension_semantics=("parallel",),
            vmem_limit_bytes=vmem_limit,
        ),
        cost_estimate=cost,
    )(x2, w1t, b1r, w2t, b2r)


def _se_two_pass(x2, w1t, b1r, w2t, b2r, S, budget, vmem_limit, tile_s):
    N, C, _ = x2.shape
    rd = w1t.shape[1]
    itemsize = jnp.dtype(x2.dtype).itemsize

    if tile_s is None:
        tile_s = (budget // (C * itemsize)) // 128 * 128
    tile_s = max(128, min(tile_s, ((S + 127) // 128) * 128))
    n_s = pl.cdiv(S, tile_s)

    # Pass 1: per-channel masked sums over S tiles -> sigmoid gate (N, C, 1).
    gate_kernel = functools.partial(
        _se_gate_kernel, inv_s=1.0 / S, true_s=S, tile_s=tile_s)
    gate = pl.pallas_call(
        gate_kernel,
        out_shape=jax.ShapeDtypeStruct((N, C, 1), jnp.float32),
        grid=(N, n_s),
        in_specs=[
            pl.BlockSpec((1, C, tile_s), lambda n, s: (n, 0, s)),
            pl.BlockSpec((C, rd), lambda n, s: (0, 0)),
            pl.BlockSpec((1, rd), lambda n, s: (0, 0)),
            pl.BlockSpec((rd, C), lambda n, s: (0, 0)),
            pl.BlockSpec((1, C), lambda n, s: (0, 0)),
        ],
        out_specs=pl.BlockSpec((1, C, 1), lambda n, s: (n, 0, 0)),
        scratch_shapes=[pltpu.VMEM((1, C), jnp.float32)],
        compiler_params=pltpu.CompilerParams(
            dimension_semantics=("parallel", "arbitrary"),
            vmem_limit_bytes=vmem_limit,
        ),
    )(x2, w1t, b1r, w2t, b2r)

    # Pass 2: stream S tiles again for the excite multiply.
    cost = pl.CostEstimate(
        flops=N * C * S,
        transcendentals=0,
        bytes_accessed=2 * N * C * S * itemsize,
    )
    return pl.pallas_call(
        _se_excite_kernel,
        out_shape=jax.ShapeDtypeStruct((N, C, S), x2.dtype),
        grid=(N, n_s),
        in_specs=[
            pl.BlockSpec((1, C, tile_s), lambda n, s: (n, 0, s)),
            pl.BlockSpec((1, C, 1), lambda n, s: (n, 0, 0)),
        ],
        out_specs=pl.BlockSpec((1, C, tile_s), lambda n, s: (n, 0, s)),
        compiler_params=pltpu.CompilerParams(
            dimension_semantics=("parallel", "parallel"),
            vmem_limit_bytes=vmem_limit,
        ),
        cost_estimate=cost,
    )(x2, gate)


def squeeze_excite_3d(x, w1, b1, w2, b2, *, two_pass=None, tile_s=None,
                      batch_block=None):
    """x: (N, C, D, H, W). w1: (rd, C), b1: (rd,), w2: (C, rd), b2: (C,)."""
    N, C, D, H, W = x.shape
    S = D * H * W
    rd = w1.shape[0]
    itemsize = jnp.dtype(x.dtype).itemsize

    # Free (metadata-only) reshape: flatten the trailing spatial dims.
    x2 = x.reshape(N, C, S)

    # Pre-transpose the tiny conv weights so the kernel does row-major dots.
    w1t = jnp.transpose(w1)          # (C, rd)
    w2t = jnp.transpose(w2)          # (rd, C)
    b1r = b1.reshape(1, rd)
    b2r = b2.reshape(1, C)

    vmem_limit = _vmem_limit_bytes()
    weight_bytes = int((w1t.size + b1r.size + w2t.size + b2r.size) *
                       jnp.dtype(w1.dtype).itemsize)
    # x and out blocks are each double-buffered -> ~4x block resident in VMEM.
    budget = max(1 << 20, (vmem_limit - weight_bytes - (2 << 20)) // 4)
    bytes_per_sample = C * S * itemsize

    if two_pass is None:
        two_pass = bytes_per_sample > budget

    if two_pass:
        out = _se_two_pass(x2, w1t, b1r, w2t, b2r, S, budget, vmem_limit,
                           tile_s)
    else:
        out = _se_one_pass(x2, w1t, b1r, w2t, b2r, S, budget, vmem_limit,
                           batch_block)
    return out.reshape(N, C, D, H, W)


# ----------------------------------------------------------------------------
# Pure-JAX reference mirroring the PyTorch forward.
# ----------------------------------------------------------------------------
def _reference(x, w1, b1, w2, b2):
    se = jnp.mean(x, axis=(2, 3, 4))                          # (N, C)
    h = jnp.maximum(se @ w1.T + b1, 0.0)                      # (N, rd)
    g = jax.nn.sigmoid(h @ w2.T + b2)                         # (N, C)
    return x * g[:, :, None, None, None]


if __name__ == "__main__":
    def make_inputs(key, N, C, D, H, W, reduce_ratio=4):
        rd = max(1, C // reduce_ratio)
        kx, kw1, kb1, kw2, kb2 = jax.random.split(key, 5)
        x = jax.random.normal(kx, (N, C, D, H, W), dtype=jnp.float32)
        # Conv3d 1x1x1 weights: (out_ch, in_ch, 1, 1, 1) squeezed to 2D.
        w1 = jax.random.normal(kw1, (rd, C), dtype=jnp.float32) * 0.1
        b1 = jax.random.normal(kb1, (rd,), dtype=jnp.float32) * 0.1
        w2 = jax.random.normal(kw2, (C, rd), dtype=jnp.float32) * 0.1
        b2 = jax.random.normal(kb2, (C,), dtype=jnp.float32) * 0.1
        return x, w1, b1, w2, b2

    # 1) Fused one-pass path, lane-aligned spatial size (8*8*8 = 512).
    x, w1, b1, w2, b2 = make_inputs(jax.random.PRNGKey(0), 2, 32, 8, 8, 8)
    out = jax.block_until_ready(squeeze_excite_3d(x, w1, b1, w2, b2))
    np.testing.assert_allclose(np.asarray(out),
                               np.asarray(_reference(x, w1, b1, w2, b2)),
                               rtol=1e-5, atol=1e-5)

    # 2) One-pass path with a non-128-multiple spatial size (7*7*7 = 343) and a
    #    forced ragged batch block (exercises masked tail stores + ragged grid).
    x, w1, b1, w2, b2 = make_inputs(jax.random.PRNGKey(1), 3, 32, 7, 7, 7)
    out = jax.block_until_ready(
        squeeze_excite_3d(x, w1, b1, w2, b2, batch_block=2))
    np.testing.assert_allclose(np.asarray(out),
                               np.asarray(_reference(x, w1, b1, w2, b2)),
                               rtol=1e-5, atol=1e-5)

    # 3) Forced S-tiled two-pass fallback (tile_s=128 over S=512).
    x, w1, b1, w2, b2 = make_inputs(jax.random.PRNGKey(2), 2, 32, 8, 8, 8)
    out = jax.block_until_ready(
        squeeze_excite_3d(x, w1, b1, w2, b2, two_pass=True, tile_s=128))
    np.testing.assert_allclose(np.asarray(out),
                               np.asarray(_reference(x, w1, b1, w2, b2)),
                               rtol=1e-5, atol=1e-5)

    print("KERNEL_OK")
</pallas_src>

<mosaic_0001>
module attributes {stable_mosaic.version = 11 : i64} {
  func.func @_se_fused_kernel(%arg0: i32, %arg1: memref<2x32x512xf32, #tpu.memory_space<vmem>>, %arg2: memref<32x8xf32, #tpu.memory_space<vmem>>, %arg3: memref<1x8xf32, #tpu.memory_space<vmem>>, %arg4: memref<8x32xf32, #tpu.memory_space<vmem>>, %arg5: memref<1x32xf32, #tpu.memory_space<vmem>>, %arg6: memref<2x32x512xf32, #tpu.memory_space<vmem>>) attributes {dimension_semantics = [#tpu.dimension_semantics<parallel>], iteration_bounds = array<i64: 1>, scalar_prefetch = 0 : i64, scratch_operands = 0 : i64, tpu.core_type = #tpu.core_type<tc>, window_params = [{transform_indices = @transform_0, window_bounds = array<i64: 2, 32, 512>}, {pipeline_mode = #tpu.pipeline_mode<synchronous>, transform_indices = @transform_1, window_bounds = array<i64: 32, 8>}, {pipeline_mode = #tpu.pipeline_mode<synchronous>, transform_indices = @transform_2, window_bounds = array<i64: 1, 8>}, {pipeline_mode = #tpu.pipeline_mode<synchronous>, transform_indices = @transform_3, window_bounds = array<i64: 8, 32>}, {pipeline_mode = #tpu.pipeline_mode<synchronous>, transform_indices = @transform_4, window_bounds = array<i64: 1, 32>}, {transform_indices = @transform_5, window_bounds = array<i64: 2, 32, 512>}]} {
    %c0 = arith.constant 0 : index
    %c0_0 = arith.constant 0 : index
    %c0_1 = arith.constant 0 : index
    %0 = vector.load %arg1[%c0, %c0_0, %c0_1] : memref<2x32x512xf32, #tpu.memory_space<vmem>>, vector<2x32x512xf32>
    %cst = arith.constant dense<0.000000e+00> : vector<2x32xf32>
    %1 = vector.multi_reduction <add>, %0, %cst [2] : vector<2x32x512xf32> to vector<2x32xf32>
    %cst_2 = arith.constant 0.001953125 : f32
    %2 = vector.broadcast %cst_2 : f32 to vector<2x32xf32>
    %3 = arith.mulf %1, %2 : vector<2x32xf32>
    %c0_3 = arith.constant 0 : index
    %c0_4 = arith.constant 0 : index
    %4 = vector.load %arg2[%c0_3, %c0_4] : memref<32x8xf32, #tpu.memory_space<vmem>>, vector<32x8xf32>
    %cst_5 = arith.constant dense<0.000000e+00> : vector<2x8xf32>
    %5 = tpu.matmul %3, %4, %cst_5 {dimension_numbers = #tpu.dot_dimension_numbers<[1], [0], [0], [1], [0, 0, 1, 1], [], []>} : vector<2x32xf32>, vector<32x8xf32>, vector<2x8xf32> -> vector<2x8xf32>
    %c0_6 = arith.constant 0 : index
    %c0_7 = arith.constant 0 : index
    %6 = vector.load %arg3[%c0_6, %c0_7] : memref<1x8xf32, #tpu.memory_space<vmem>>, vector<1x8xf32>
    %7 = vector.broadcast %6 : vector<1x8xf32> to vector<2x8xf32>
    %8 = arith.addf %5, %7 : vector<2x8xf32>
    %cst_8 = arith.constant 0.000000e+00 : f32
    %9 = vector.broadcast %cst_8 : f32 to vector<2x8xf32>
    %10 = arith.maximumf %8, %9 : vector<2x8xf32>
    %c0_9 = arith.constant 0 : index
    %c0_10 = arith.constant 0 : index
    %11 = vector.load %arg4[%c0_9, %c0_10] : memref<8x32xf32, #tpu.memory_space<vmem>>, vector<8x32xf32>
    %cst_11 = arith.constant dense<0.000000e+00> : vector<2x32xf32>
    %12 = tpu.matmul %10, %11, %cst_11 {dimension_numbers = #tpu.dot_dimension_numbers<[1], [0], [0], [1], [0, 0, 1, 1], [], []>} : vector<2x8xf32>, vector<8x32xf32>, vector<2x32xf32> -> vector<2x32xf32>
    %c0_12 = arith.constant 0 : index
    %c0_13 = arith.constant 0 : index
    %13 = vector.load %arg5[%c0_12, %c0_13] : memref<1x32xf32, #tpu.memory_space<vmem>>, vector<1x32xf32>
    %14 = vector.broadcast %13 : vector<1x32xf32> to vector<2x32xf32>
    %15 = arith.addf %12, %14 : vector<2x32xf32>
    %16 = arith.negf %15 : vector<2x32xf32>
    %17 = math.exp %16 : vector<2x32xf32>
    %cst_14 = arith.constant 1.000000e+00 : f32
    %18 = vector.broadcast %cst_14 : f32 to vector<2x32xf32>
    %19 = arith.addf %18, %17 : vector<2x32xf32>
    %20 = arith.divf %18, %19 : vector<2x32xf32>
    %21 = vector.shape_cast %20 : vector<2x32xf32> to vector<2x32x1xf32>
    %22 = vector.broadcast %21 : vector<2x32x1xf32> to vector<2x32x512xf32>
    %23 = arith.mulf %0, %22 : vector<2x32x512xf32>
    %c0_15 = arith.constant 0 : index
    %c0_16 = arith.constant 0 : index
    %c0_17 = arith.constant 0 : index
    %24 = vector.load %arg6[%c0_15, %c0_16, %c0_17] : memref<2x32x512xf32, #tpu.memory_space<vmem>>, vector<2x32x512xf32>
    tpu.vector_store %arg6[%c0_15, %c0_16, %c0_17], %23 {strides = array<i32>} : memref<2x32x512xf32, #tpu.memory_space<vmem>>, vector<2x32x512xf32>,
    return
  }
  func.func @transform_0(%arg0: i32) -> (i32, i32, i32) {
    %c0_i32 = arith.constant 0 : i32
    %c0_i32_0 = arith.constant 0 : i32
    %c0_i32_1 = arith.constant 0 : i32
    return %arg0, %c0_i32, %c0_i32_0 : i32, i32, i32
  }
  func.func @transform_1(%arg0: i32) -> (i32, i32) {
    %c0_i32 = arith.constant 0 : i32
    %c0_i32_0 = arith.constant 0 : i32
    %c0_i32_1 = arith.constant 0 : i32
    return %c0_i32, %c0_i32_0 : i32, i32
  }
  func.func @transform_2(%arg0: i32) -> (i32, i32) {
    %c0_i32 = arith.constant 0 : i32
    %c0_i32_0 = arith.constant 0 : i32
    %c0_i32_1 = arith.constant 0 : i32
    return %c0_i32, %c0_i32_0 : i32, i32
  }
  func.func @transform_3(%arg0: i32) -> (i32, i32) {
    %c0_i32 = arith.constant 0 : i32
    %c0_i32_0 = arith.constant 0 : i32
    %c0_i32_1 = arith.constant 0 : i32
    return %c0_i32, %c0_i32_0 : i32, i32
  }
  func.func @transform_4(%arg0: i32) -> (i32, i32) {
    %c0_i32 = arith.constant 0 : i32
    %c0_i32_0 = arith.constant 0 : i32
    %c0_i32_1 = arith.constant 0 : i32
    return %c0_i32, %c0_i32_0 : i32, i32
  }
  func.func @transform_5(%arg0: i32) -> (i32, i32, i32) {
    %c0_i32 = arith.constant 0 : i32
    %c0_i32_0 = arith.constant 0 : i32
    %c0_i32_1 = arith.constant 0 : i32
    return %arg0, %c0_i32, %c0_i32_0 : i32, i32, i32
  }
}

</mosaic_0001>

<llo_original>
// kernel: tpu_custom_call.1
$region0: #{tpu_custom_call.1}
  #allocation0 [shape = 'u32[]', space=smem, size = 0x4, offset = 0x4, fixed_abs, tag = 'smem constant byte address 0x4 - core index']
  #allocation1 [shape = 'u32[72,128]{1,0:T(1,128)}', space=vmem, size = 0x9000, scoped, tag = 'internal scratch']
  %s0 = inlined_call_operand.hbm [shape: f32[2,32,512], index: 0, kind: input, shape index: {}]
  %s1 = inlined_call_operand.vmem [shape: f32[32,8], index: 1, kind: input, shape index: {}]
  %s2 = inlined_call_operand.vmem [shape: f32[1,8], index: 2, kind: input, shape index: {}]
  %s3 = inlined_call_operand.vmem [shape: f32[8,32], index: 3, kind: input, shape index: {}]
  %s4 = inlined_call_operand.vmem [shape: f32[1,32], index: 4, kind: input, shape index: {}]
  %s5 = inlined_call_operand.hbm [shape: f32[2,32,512], index: 5, kind: output, shape index: {}]
  %s6 = sld [smem:[#allocation0]]
  $region34: #{tpu_custom_call.1} parent=0
    _
  %s8 = ssub.s32 1, %s6
  %s9 = scalar_select 0, %s8, %s6
  $region1: #{tpu_custom_call.1} parent=0
    #allocation2 [shape = 'u8[131072]{0}', space=vmem, size = 0x20000, scoped, tag = 'input window, operand 0, single buffered']
    #allocation3 [shape = 's32[1]{0}', space=sflag, size = 0x4, scoped, tag = 'scoped memory for tpu_custom_call.1']
    #allocation4 [shape = 's32[1]{0}', space=sflag, size = 0x4, scoped, tag = 'scoped memory for tpu_custom_call.1']
    #allocation5 [shape = 'u8[131072]{0}', space=vmem, size = 0x20000, scoped, tag = 'output window, operand 0, single buffered']
    %10 = vsyncpa [#allocation3], 0
    %11 = vsyncpa [#allocation4], 0
    // Predicated region
    $region2: #{tpu_custom_call.1} parent=1 // pred_check
      _
    $region3: #{tpu_custom_call.1} parent=1 // pred_check_branch
      %13 = sbr.rel (0) target = $region5
    $region4: #{tpu_custom_call.1} parent=1 // pred_region
      %15 = vsyncadd [#allocation3], 0
      %s16 = sshll.u32 %s0, 4
      %s17 = int_to_ptr.hbm [resolvable:$true] %s16
      %s18 = sshll.u32 [#allocation2], 4
      %s19 = int_to_ptr.vmem [resolvable:$true] %s18
      %24 = dma.hbm_to_vmem [thread:$0]  %s17, 4096, %s19, [#allocation3], 512, 512, 32
    $region5: #{tpu_custom_call.1} parent=1 // pred_fallthru
      _
    // Predicated region
    $region6: #{tpu_custom_call.1} parent=1 // pred_check
      _
    $region7: #{tpu_custom_call.1} parent=1 // pred_check_branch
      %26 = sbr.rel (0) target = $region9
    $region8: #{tpu_custom_call.1} parent=1 // pred_region
      _
    $region9: #{tpu_custom_call.1} parent=1 // pred_fallthru
      _
    // Predicated region
    $region10: #{tpu_custom_call.1} parent=1 // pred_check
      _
    $region11: #{tpu_custom_call.1} parent=1 // pred_check_branch
      %28 = sbr.rel (0) target = $region13
    $region12: #{tpu_custom_call.1} parent=1 // pred_region
      _
    $region13: #{tpu_custom_call.1} parent=1 // pred_fallthru
      _
    // Predicated region
    $region14: #{tpu_custom_call.1} parent=1 // pred_check
      _
    $region15: #{tpu_custom_call.1} parent=1 // pred_check_branch
      %30 = sbr.rel (0) target = $region17
    $region16: #{tpu_custom_call.1} parent=1 // pred_region
      _
    $region17: #{tpu_custom_call.1} parent=1 // pred_fallthru
      _
    // Predicated region
    $region18: #{tpu_custom_call.1} parent=1 // pred_check
      _
    $region19: #{tpu_custom_call.1} parent=1 // pred_check_branch
      %32 = sbr.rel (0) target = $region21
    $region20: #{tpu_custom_call.1} parent=1 // pred_region
      _
    $region21: #{tpu_custom_call.1} parent=1 // pred_fallthru
      _
    // Predicated region
    $region22: #{tpu_custom_call.1} parent=1 // pred_check
      _
    $region23: #{tpu_custom_call.1} parent=1 // pred_check_branch
      %34 = sbr.rel (0) target = $region25
    $region24: #{tpu_custom_call.1} parent=1 // pred_region
      %36 = dma.done [#allocation3], 4096
    $region25: #{tpu_custom_call.1} parent=1 // pred_fallthru
      _
    %v37 = vld [vmem:[#allocation2] sm:$0xff]
    %v38 = vld [vmem:[#allocation2 + $0x8] sm:$0xff]
    %v39 = vld [vmem:[#allocation2 + $0x10] sm:$0xff]
    %v40 = vld [vmem:[#allocation2 + $0x18] sm:$0xff]
    %v41 = vld [vmem:[#allocation2 + $0x20] sm:$0xff]
    %v42 = vld [vmem:[#allocation2 + $0x28] sm:$0xff]
    %v43 = vld [vmem:[#allocation2 + $0x30] sm:$0xff]
    %v44 = vld [vmem:[#allocation2 + $0x38] sm:$0xff]
    %v45 = vld [vmem:[#allocation2 + $0x40] sm:$0xff]
    %v46 = vld [vmem:[#allocation2 + $0x48] sm:$0xff]
    %v47 = vld [vmem:[#allocation2 + $0x50] sm:$0xff]
    %v48 = vld [vmem:[#allocation2 + $0x58] sm:$0xff]
    %v49 = vld [vmem:[#allocation2 + $0x60] sm:$0xff]
    %v50 = vld [vmem:[#allocation2 + $0x68] sm:$0xff]
    %v51 = vld [vmem:[#allocation2 + $0x70] sm:$0xff]
    %v52 = vld [vmem:[#allocation2 + $0x78] sm:$0xff]
    %v53 = vld [vmem:[#allocation2 + $0x80] sm:$0xff]
    %v54 = vld [vmem:[#allocation2 + $0x88] sm:$0xff]
    %v55 = vld [vmem:[#allocation2 + $0x90] sm:$0xff]
    %v56 = vld [vmem:[#allocation2 + $0x98] sm:$0xff]
    %v57 = vld [vmem:[#allocation2 + $0xa0] sm:$0xff]
    %v58 = vld [vmem:[#allocation2 + $0xa8] sm:$0xff]
    %v59 = vld [vmem:[#allocation2 + $0xb0] sm:$0xff]
    %v60 = vld [vmem:[#allocation2 + $0xb8] sm:$0xff]
    %v61 = vld [vmem:[#allocation2 + $0xc0] sm:$0xff]
    %v62 = vld [vmem:[#allocation2 + $0xc8] sm:$0xff]
    %v63 = vld [vmem:[#allocation2 + $0xd0] sm:$0xff]
    %v64 = vld [vmem:[#allocation2 + $0xd8] sm:$0xff]
    %v65 = vld [vmem:[#allocation2 + $0xe0] sm:$0xff]
    %v66 = vld [vmem:[#allocation2 + $0xe8] sm:$0xff]
    %v67 = vld [vmem:[#allocation2 + $0xf0] sm:$0xff]
    %v68 = vld [vmem:[#allocation2 + $0xf8] sm:$0xff]
    %v69 = vadd.f32 %v37, %v38
    %v70 = vadd.f32 %v69, %v39
    %v71 = vadd.f32 %v70, %v40
    %72 = vadd.xlane.f32.xlu0 %v71
    %v73 = vpop.xlane.xlu0 %72
    %v74 = vadd.f32 %v41, %v42
    %v75 = vadd.f32 %v74, %v43
    %v76 = vadd.f32 %v75, %v44
    %77 = vadd.xlane.f32.xlu0 %v76
    %v78 = vpop.xlane.xlu0 %77
    %v79 = vadd.f32 %v45, %v46
    %v80 = vadd.f32 %v79, %v47
    %v81 = vadd.f32 %v80, %v48
    %82 = vadd.xlane.f32.xlu0 %v81
    %v83 = vpop.xlane.xlu0 %82
    %v84 = vadd.f32 %v49, %v50
    %v85 = vadd.f32 %v84, %v51
    %v86 = vadd.f32 %v85, %v52
    %87 = vadd.xlane.f32.xlu0 %v86
    %v88 = vpop.xlane.xlu0 %87
    %v89 = vadd.f32 %v53, %v54
    %v90 = vadd.f32 %v89, %v55
    %v91 = vadd.f32 %v90, %v56
    %92 = vadd.xlane.f32.xlu0 %v91
    %v93 = vpop.xlane.xlu0 %92
    %v94 = vadd.f32 %v57, %v58
    %v95 = vadd.f32 %v94, %v59
    %v96 = vadd.f32 %v95, %v60
    %97 = vadd.xlane.f32.xlu0 %v96
    %v98 = vpop.xlane.xlu0 %97
    %v99 = vadd.f32 %v61, %v62
    %v100 = vadd.f32 %v99, %v63
    %v101 = vadd.f32 %v100, %v64
    %102 = vadd.xlane.f32.xlu0 %v101
    %v103 = vpop.xlane.xlu0 %102
    %v104 = vadd.f32 %v65, %v66
    %v105 = vadd.f32 %v104, %v67
    %v106 = vadd.f32 %v105, %v68
    %107 = vadd.xlane.f32.xlu0 %v106
    %v108 = vpop.xlane.xlu0 %107
    %v109 = vmul.f32 %v73, 0.001953125
    %v110 = vmul.f32 %v78, 0.001953125
    %v111 = vmul.f32 %v83, 0.001953125
    %v112 = vmul.f32 %v88, 0.001953125
    %v113 = vmul.f32 %v93, 0.001953125
    %v114 = vmul.f32 %v98, 0.001953125
    %v115 = vmul.f32 %v103, 0.001953125
    %v116 = vmul.f32 %v108, 0.001953125
    %v117 = vld [vmem:[%s1] sm:$0xff]
    %v118 = vld [vmem:[%s1 + $0x8] sm:$0xff]
    %v119 = vld [vmem:[%s1 + $0x10] sm:$0xff]
    %v120 = vld [vmem:[%s1 + $0x18] sm:$0xff]
    %v121 = vld [vmem:[%s2] sm:$0x1]
    %v123 = vperm.slane %v121, 0
    %v133 = vlaneseq
    %v134 = vand.u32 %v133, 127
    %v135 = vperm.slane %v109, %v134
    %v136 = vadd.s32 %v134, 4294967288
    %v137 = vperm.slane %v110, %v136
    %vm138 = vcmask 130112
    %v139 = vsel %vm138, %v137, %v135
    %v140 = vadd.s32 %v134, 4294967280
    %v141 = vperm.slane %v111, %v140
    %vm142 = vcmask 195712
    %v143 = vsel %vm142, %v141, %v139
    %v144 = vadd.s32 %v134, 4294967272
    %v145 = vperm.slane %v112, %v144
    %vm146 = vcmask 261312
    %v147 = vsel %vm146, %v145, %v143
    %v148 = vperm.slane %v113, %v134
    %v149 = vperm.slane %v114, %v136
    %v150 = vsel %vm138, %v149, %v148
    %v151 = vperm.slane %v115, %v140
    %v152 = vsel %vm142, %v151, %v150
    %v153 = vperm.slane %v116, %v144
    %v154 = vsel %vm146, %v153, %v152
    %vm155 = vcmask 1041409
    %v156 = vsel %vm155, %v154, %v147
    %vm157 = vcmask 261120
    %v158 = vsel %vm157, %v156, 0
    %160 = vmatpush.msra.mxu0 0.0
    %161 = vmatpush.msra.mxu0 0.0
    %162 = vmatpush.msra.mxu0 0.0
    %163 = vmatpush.msra.mxu0 0.0
    %164 = vmatpush.msra.mxu0 0.0
    %165 = vmatpush.msra.mxu0 0.0
    %166 = vmatpush.msra.mxu0 0.0
    %167 = vmatpush.msra.mxu0 0.0
    %168 = vmatpush.msra.mxu0 0.0
    %169 = vmatpush.msra.mxu0 0.0
    %170 = vmatpush.msra.mxu0 0.0
    %171 = vmatpush.msra.mxu0 0.0
    %172 = vmatpush.msra.mxu0 %v120
    %173 = vmatpush.msra.mxu0 %v119
    %174 = vmatpush.msra.mxu0 %v118
    %175 = vmatpush.msra.mxu0 %v117
    %176 = vmatmul.f32.gmra.mxu0 %v158
    %v177 = vpop.f32.mrf.mxu0
    %v178 = vadd.f32 %v123, %v177
    %179 = vdwg.mxu0
    %v180 = vmax.f32 %v178, 0.0
    %v181 = vld [vmem:[%s3] sm:$0xff]
    %v182 = vld [vmem:[%s4] sm:$0x1]
    %v184 = vperm.slane %v182, 0
    %vm186 = vcmask 64512
    %v188 = vsel %vm186, %v180, 0
    %190 = vmatpush.msra.mxu0 0.0
    %191 = vmatpush.msra.mxu0 0.0
    %192 = vmatpush.msra.mxu0 0.0
    %193 = vmatpush.msra.mxu0 0.0
    %194 = vmatpush.msra.mxu0 0.0
    %195 = vmatpush.msra.mxu0 0.0
    %196 = vmatpush.msra.mxu0 0.0
    %197 = vmatpush.msra.mxu0 0.0
    %198 = vmatpush.msra.mxu0 0.0
    %199 = vmatpush.msra.mxu0 0.0
    %200 = vmatpush.msra.mxu0 0.0
    %201 = vmatpush.msra.mxu0 0.0
    %202 = vmatpush.msra.mxu0 0.0
    %203 = vmatpush.msra.mxu0 0.0
    %204 = vmatpush.msra.mxu0 0.0
    %205 = vmatpush.msra.mxu0 %v181
    %206 = vmatmul.f32.gmra.mxu0 %v188
    %v207 = vpop.f32.mrf.mxu0
    %v208 = vadd.f32 %v184, %v207
    %209 = vdwg.mxu0
    %v210 = vxor.u32 %v208, 2147483648
    %v211 = vmul.f32 %v210, 1.442695
    %v212 = vpow.pop %v211
    %v213 = vadd.f32 %v212, 1.0
    %v214 = vrcp.pop %v213
    %v215 = vmul.f32 %v213, %v214
    %v216 = vsub.f32 1.0, %v215
    %v217 = vmul.f32 %v214, %v216
    %v218 = vadd.f32 %v214, %v217
    %vm219 = vweird.f32 %v213
    %vm220 = vweird.f32 %v214
    %vm221 = vmor %vm219, %vm220
    %v222 = vsel %vm221, %v214, %v218
    %v223 = vand.u32 2147483647, %v213
    %vm224 = vcmp.eq.f32.partialorder %v223, 8.507059e+37
    %v225 = vand.u32 %v213, 2147483648
    %v226 = vor.u32 1.1754944e-38, %v225
    %v227 = vsel %vm224, %v226, %v222
    %v228 = vmul.f32 1.0, %v227
    %v229 = vperm.slane %v228, 0
    %v230 = vlaneseq
    %v231 = vshrl.u32 %v230, 7
    %233 = vset.pattern.permute.xlu0 %v231
    %234 = vperm.xlu0 %233, %v229
    %v235 = vpop.permute.xlu0 %234
    %v236 = vlaneseq
    %v237 = vshrl.u32 %v236, 7
    %v238 = vadd.s32 %v237, 8
    %239 = vset.pattern.permute.xlu0 %v238
    %240 = vperm.xlu0 %239, %v229
    %v241 = vpop.permute.xlu0 %240
    %v242 = vlaneseq
    %v243 = vshrl.u32 %v242, 7
    %v244 = vadd.s32 %v243, 16
    %245 = vset.pattern.permute.xlu0 %v244
    %246 = vperm.xlu0 %245, %v229
    %v247 = vpop.permute.xlu0 %246
    %v248 = vlaneseq
    %v249 = vshrl.u32 %v248, 7
    %v250 = vadd.s32 %v249, 24
    %251 = vset.pattern.permute.xlu0 %v250
    %252 = vperm.xlu0 %251, %v229
    %v253 = vpop.permute.xlu0 %252
    %v254 = vperm.slane %v228, 1
    %v255 = vlaneseq
    %v256 = vshrl.u32 %v255, 7
    %258 = vset.pattern.permute.xlu0 %v256
    %259 = vperm.xlu0 %258, %v254
    %v260 = vpop.permute.xlu0 %259
    %v261 = vlaneseq
    %v262 = vshrl.u32 %v261, 7
    %v263 = vadd.s32 %v262, 8
    %264 = vset.pattern.permute.xlu0 %v263
    %265 = vperm.xlu0 %264, %v254
    %v266 = vpop.permute.xlu0 %265
    %v267 = vlaneseq
    %v268 = vshrl.u32 %v267, 7
    %v269 = vadd.s32 %v268, 16
    %270 = vset.pattern.permute.xlu0 %v269
    %271 = vperm.xlu0 %270, %v254
    %v272 = vpop.permute.xlu0 %271
    %v273 = vlaneseq
    %v274 = vshrl.u32 %v273, 7
    %v275 = vadd.s32 %v274, 24
    %276 = vset.pattern.permute.xlu0 %v275
    %277 = vperm.xlu0 %276, %v254
    %v278 = vpop.permute.xlu0 %277
    %v279 = vmul.f32 %v37, %v235
    %v280 = vmul.f32 %v38, %v235
    %v281 = vmul.f32 %v39, %v235
    %v282 = vmul.f32 %v40, %v235
    %v283 = vmul.f32 %v41, %v241
    %v284 = vmul.f32 %v42, %v241
    %v285 = vmul.f32 %v43, %v241
    %v286 = vmul.f32 %v44, %v241
    %v287 = vmul.f32 %v45, %v247
    %v288 = vmul.f32 %v46, %v247
    %v289 = vmul.f32 %v47, %v247
    %v290 = vmul.f32 %v48, %v247
    %v291 = vmul.f32 %v49, %v253
    %v292 = vmul.f32 %v50, %v253
    %v293 = vmul.f32 %v51, %v253
    %v294 = vmul.f32 %v52, %v253
    %v295 = vmul.f32 %v53, %v260
    %v296 = vmul.f32 %v54, %v260
    %v297 = vmul.f32 %v55, %v260
    %v298 = vmul.f32 %v56, %v260
    %v299 = vmul.f32 %v57, %v266
    %v300 = vmul.f32 %v58, %v266
    %v301 = vmul.f32 %v59, %v266
    %v302 = vmul.f32 %v60, %v266
    %v303 = vmul.f32 %v61, %v272
    %v304 = vmul.f32 %v62, %v272
    %v305 = vmul.f32 %v63, %v272
    %v306 = vmul.f32 %v64, %v272
    %v307 = vmul.f32 %v65, %v278
    %v308 = vmul.f32 %v66, %v278
    %v309 = vmul.f32 %v67, %v278
    %v310 = vmul.f32 %v68, %v278
    %311 = vst [vmem:[#allocation5] sm:$0xff] %v279
    %312 = vst [vmem:[#allocation5 + $0x8] sm:$0xff] %v280
    %313 = vst [vmem:[#allocation5 + $0x10] sm:$0xff] %v281
    %314 = vst [vmem:[#allocation5 + $0x18] sm:$0xff] %v282
    %315 = vst [vmem:[#allocation5 + $0x20] sm:$0xff] %v283
    %316 = vst [vmem:[#allocation5 + $0x28] sm:$0xff] %v284
    %317 = vst [vmem:[#allocation5 + $0x30] sm:$0xff] %v285
    %318 = vst [vmem:[#allocation5 + $0x38] sm:$0xff] %v286
    %319 = vst [vmem:[#allocation5 + $0x40] sm:$0xff] %v287
    %320 = vst [vmem:[#allocation5 + $0x48] sm:$0xff] %v288
    %321 = vst [vmem:[#allocation5 + $0x50] sm:$0xff] %v289
    %322 = vst [vmem:[#allocation5 + $0x58] sm:$0xff] %v290
    %323 = vst [vmem:[#allocation5 + $0x60] sm:$0xff] %v291
    %324 = vst [vmem:[#allocation5 + $0x68] sm:$0xff] %v292
    %325 = vst [vmem:[#allocation5 + $0x70] sm:$0xff] %v293
    %326 = vst [vmem:[#allocation5 + $0x78] sm:$0xff] %v294
    %327 = vst [vmem:[#allocation5 + $0x80] sm:$0xff] %v295
    %328 = vst [vmem:[#allocation5 + $0x88] sm:$0xff] %v296
    %329 = vst [vmem:[#allocation5 + $0x90] sm:$0xff] %v297
    %330 = vst [vmem:[#allocation5 + $0x98] sm:$0xff] %v298
    %331 = vst [vmem:[#allocation5 + $0xa0] sm:$0xff] %v299
    %332 = vst [vmem:[#allocation5 + $0xa8] sm:$0xff] %v300
    %333 = vst [vmem:[#allocation5 + $0xb0] sm:$0xff] %v301
    %334 = vst [vmem:[#allocation5 + $0xb8] sm:$0xff] %v302
    %335 = vst [vmem:[#allocation5 + $0xc0] sm:$0xff] %v303
    %336 = vst [vmem:[#allocation5 + $0xc8] sm:$0xff] %v304
    %337 = vst [vmem:[#allocation5 + $0xd0] sm:$0xff] %v305
    %338 = vst [vmem:[#allocation5 + $0xd8] sm:$0xff] %v306
    %339 = vst [vmem:[#allocation5 + $0xe0] sm:$0xff] %v307
    %340 = vst [vmem:[#allocation5 + $0xe8] sm:$0xff] %v308
    %341 = vst [vmem:[#allocation5 + $0xf0] sm:$0xff] %v309
    %342 = vst [vmem:[#allocation5 + $0xf8] sm:$0xff] %v310
    // Predicated region
    $region26: #{tpu_custom_call.1} parent=1 // pred_check
      _
    $region27: #{tpu_custom_call.1} parent=1 // pred_check_branch
      %344 = sbr.rel (0) target = $region29
    $region28: #{tpu_custom_call.1} parent=1 // pred_region
      %346 = vsyncadd [#allocation4], 0
      %s347 = sshll.u32 [#allocation5], 4
      %s348 = int_to_ptr.vmem [resolvable:$true] %s347
      %s349 = sshll.u32 %s5, 4
      %s350 = int_to_ptr.hbm [resolvable:$true] %s349
      %355 = dma.vmem_to_hbm [thread:$0]  %s348, 4096, %s350, [#allocation4], 512, 512, 32
    $region29: #{tpu_custom_call.1} parent=1 // pred_fallthru
      _
    // Predicated region
    $region30: #{tpu_custom_call.1} parent=1 // pred_check
      _
    $region31: #{tpu_custom_call.1} parent=1 // pred_check_branch
      %357 = sbr.rel (0) target = $region33
    $region32: #{tpu_custom_call.1} parent=1 // pred_region
      %359 = dma.done [#allocation4], 4096
    $region33: #{tpu_custom_call.1} parent=1 // pred_fallthru
      _
    %360 = vsyncpa [#allocation3], 1
    %361 = vsyncpa [#allocation4], 1

</llo_original>
